<compile_context>
chip_gen: v7x
topology: tpu7x:2x2x1
jax: 0.10.0
libtpu: 0.0.40
codegen_flags: <defaults>
</compile_context>

<pallas_src>
import functools
import math

import jax
import jax.numpy as jnp
from jax import lax
from jax.experimental import pallas as pl
from jax.experimental.pallas import tpu as pltpu


_MASK = -1e30  # large finite negative: avoids (-inf) - (-inf) NaNs in online softmax


def _round_up(x, m):
    return (x + m - 1) // m * m


def _dot_nt(a, b):
    """a: (m, k), b: (n, k) -> (m, n), f32 accumulation on the MXU."""
    return lax.dot_general(a, b, (((1,), (1,)), ((), ())),
                           preferred_element_type=jnp.float32)


def _tile_scores(q, k, r_ref, qi, ki, *, seq_len, blk, w_pad, roll_dtype):
    """Scores for one (query tile, key tile) pair, incl. the relative term."""
    s = _dot_nt(q, k)                                          # (blk, blk) f32; 1/sqrt(d) folded into Wk

    # Relative-position term: M = Q @ R_window^T (MXU), then the skewing trick
    # as a stride-1 per-row lane rotation (XLU, off the VALU critical path).
    # r_ref[0] is a zero row; r_ref[1 + t] = rel_emb[offset t - (L - 1)].
    start = pl.multiple_of((ki - qi) * blk + (seq_len - blk), 8)
    r_win = r_ref[pl.ds(start, w_pad), :]                      # (w_pad, d)
    m_rel = _dot_nt(q, r_win)                                  # (blk, w_pad) f32
    # S_rel[a, b] = m_rel[a, b - a + blk]; per-row roll amount = w_pad - blk + a.
    s_rel = pltpu.roll(m_rel.astype(roll_dtype), w_pad - blk, 1,
                       stride=1, stride_axis=0)
    return s + s_rel[:, :blk].astype(jnp.float32)


def _init_state(m_ref, l_ref, acc_ref):
    m_ref[...] = jnp.full_like(m_ref, _MASK)
    l_ref[...] = jnp.zeros_like(l_ref)
    acc_ref[...] = jnp.zeros_like(acc_ref)


def _online_update(s, v, m_ref, l_ref, acc_ref):
    m_prev = m_ref[...]                                        # (blk, 1)
    m_new = jnp.maximum(m_prev, jnp.max(s, axis=-1, keepdims=True))
    alpha = jnp.exp(m_prev - m_new)
    p = jnp.exp(s - m_new)                                     # (blk, blk) f32
    l_ref[...] = alpha * l_ref[...] + jnp.sum(p, axis=-1, keepdims=True)
    acc_ref[...] = alpha * acc_ref[...] + jnp.dot(
        p.astype(v.dtype), v, preferred_element_type=jnp.float32)
    m_ref[...] = m_new


def _store_output(o_ref, l_ref, acc_ref):
    # Exact reciprocal: once per query tile on the EUP, effectively free.
    inv_l = pl.reciprocal(l_ref[...], approx=False)
    o_ref[0] = (acc_ref[...] * inv_l).astype(o_ref.dtype)


def _causal_kernel(qi_map, ki_map, q_ref, k_ref, v_ref, r_ref, o_ref,
                   m_ref, l_ref, acc_ref, *, seq_len, blk, w_pad, roll_dtype):
    t = pl.program_id(1)
    qi = qi_map[t]
    ki = ki_map[t]

    @pl.when(ki == 0)
    def _():
        _init_state(m_ref, l_ref, acc_ref)

    s = _tile_scores(q_ref[0], k_ref[0], r_ref, qi, ki,
                     seq_len=seq_len, blk=blk, w_pad=w_pad, roll_dtype=roll_dtype)
    # Single global causal select (on strictly-past tiles it is always-true VPU
    # filler; keeping one traced body instead of two halves the code footprint).
    row = qi * blk + lax.broadcasted_iota(jnp.int32, s.shape, 0)
    col = ki * blk + lax.broadcasted_iota(jnp.int32, s.shape, 1)
    s = jnp.where(col <= row, s, _MASK)

    _online_update(s, v_ref[0], m_ref, l_ref, acc_ref)

    @pl.when(ki == qi)   # diagonal tile is the last kv step of this query tile
    def _():
        _store_output(o_ref, l_ref, acc_ref)


def _full_kernel(q_ref, k_ref, v_ref, r_ref, o_ref,
                 m_ref, l_ref, acc_ref, *, seq_len, blk, w_pad, roll_dtype):
    qi = pl.program_id(1)
    ki = pl.program_id(2)

    @pl.when(ki == 0)
    def _():
        _init_state(m_ref, l_ref, acc_ref)

    s = _tile_scores(q_ref[0], k_ref[0], r_ref, qi, ki,
                     seq_len=seq_len, blk=blk, w_pad=w_pad, roll_dtype=roll_dtype)
    _online_update(s, v_ref[0], m_ref, l_ref, acc_ref)

    @pl.when(ki == pl.num_programs(2) - 1)
    def _():
        _store_output(o_ref, l_ref, acc_ref)


def relative_attention_head(x, wq, wk, wv, rel_weight, max_len, head_size,
                            mask=True, *, block_size=None,
                            compute_dtype=jnp.bfloat16):
    """x: (B, L, n_embd); wq/wk/wv: (head_size, n_embd) (PyTorch Linear layout);
    rel_weight: (2*max_len - 1, head_size).  Returns (B, L, head_size)."""
    B, L, E = x.shape
    d = head_size
    if L > max_len:
        raise ValueError(f"sequence length {L} exceeds max_len {max_len} "
                         "(relative-embedding indices would be out of range)")

    # --- tile size (query tile == key tile) -------------------------------
    if block_size is None:
        blk = next((t for t in (512, 256, 128) if L % t == 0), L)
        if blk == L and L > 1024:
            raise ValueError(
                f"L={L} has no valid tile among (512, 256, 128); pad the sequence "
                "to a multiple of 128 or pass an explicit block_size")
    else:
        blk = block_size
        if blk > L or L % blk != 0 or (blk % 8 != 0 and blk != L):
            raise ValueError(
                f"block_size={blk} must divide L={L} and be a multiple of 8")
    nq = L // blk
    w_pad = _round_up(2 * blk - 1, 128)   # == 2*blk whenever blk % 128 == 0
    cd = jnp.dtype(compute_dtype)

    # --- fused QKV projection (one lane-dense (E, 3d) matmul; score scale
    #     1/sqrt(d) folded into the K weights so the kernel never scales (L,L))
    scale = 1.0 / math.sqrt(d)
    wqkv = jnp.concatenate([wq.T, wk.T * scale, wv.T], axis=1).astype(cd)   # (E, 3d)
    qkv = jnp.einsum('ble,ef->blf', x.astype(cd), wqkv,
                     preferred_element_type=jnp.float32).astype(cd)         # (B, L, 3d)
    q = qkv[..., :d]
    k = qkv[..., d:2 * d]
    v = qkv[..., 2 * d:]

    # --- relative embeddings: offsets -(L-1)..(L-1), one leading zero row ---
    rel_idx = jnp.arange(-L + 1, L) + (max_len - 1)
    r_l = rel_weight[rel_idx].astype(cd)                                    # (2L-1, d)
    r_rows = _round_up(2 * L - 2 * blk + w_pad, 8)
    r_pad = jnp.zeros((r_rows, d), cd).at[1:2 * L].set(r_l)

    # --- VMEM budget: double-buffered I/O tiles + resident rel table +
    #     scratch + f32 temporaries, with 2x headroom (replaces blanket 48 MiB)
    lanes = _round_up(d, 128)
    sub = _round_up(blk, 8)
    io_b = 4 * 2 * sub * lanes * cd.itemsize                  # Q, K, V, out tiles
    rel_b = 2 * r_rows * lanes * cd.itemsize                  # resident rel table
    scratch_b = (2 * sub * 128 + sub * lanes) * 4             # m, l, acc
    tmp_b = sub * (2 * _round_up(blk, 128) + 2 * w_pad) * 4   # s, p, m_rel, s_rel
    vmem_limit = int(min(64 << 20,
                         max(2 * (io_b + rel_b + scratch_b + tmp_b) + (4 << 20),
                             16 << 20)))

    scratch = [
        pltpu.VMEM((blk, 1), jnp.float32),   # running max
        pltpu.VMEM((blk, 1), jnp.float32),   # running denom
        pltpu.VMEM((blk, d), jnp.float32),   # output accumulator
    ]
    out_shape = jax.ShapeDtypeStruct((B, L, d), x.dtype)
    kern_kwargs = dict(seq_len=L, blk=blk, w_pad=w_pad, roll_dtype=cd)

    if mask:
        # Flat lower-triangular schedule: one grid step per real (qi, ki<=qi)
        # pair; the per-batch kv sweep stays in-order so the online softmax
        # accumulators remain valid.  Tile maps live in SMEM (scalar prefetch).
        qi_idx, ki_idx = [], []
        for qq in range(nq):
            for kk in range(qq + 1):
                qi_idx.append(qq)
                ki_idx.append(kk)
        qi_map = jnp.asarray(qi_idx, jnp.int32)
        ki_map = jnp.asarray(ki_idx, jnp.int32)
        n_steps = len(qi_idx)

        grid_spec = pltpu.PrefetchScalarGridSpec(
            num_scalar_prefetch=2,
            grid=(B, n_steps),
            in_specs=[
                pl.BlockSpec((1, blk, d), lambda b, t, qm, km: (b, qm[t], 0)),  # Q
                pl.BlockSpec((1, blk, d), lambda b, t, qm, km: (b, km[t], 0)),  # K
                pl.BlockSpec((1, blk, d), lambda b, t, qm, km: (b, km[t], 0)),  # V
                pl.BlockSpec((r_rows, d), lambda b, t, qm, km: (0, 0)),         # rel emb
            ],
            out_specs=pl.BlockSpec((1, blk, d), lambda b, t, qm, km: (b, qm[t], 0)),
            scratch_shapes=scratch,
        )
        return pl.pallas_call(
            functools.partial(_causal_kernel, **kern_kwargs),
            out_shape=out_shape,
            grid_spec=grid_spec,
            compiler_params=pltpu.CompilerParams(
                dimension_semantics=("parallel", "arbitrary"),
                vmem_limit_bytes=vmem_limit),
        )(qi_map, ki_map, q, k, v, r_pad)

    grid_spec = pltpu.PrefetchScalarGridSpec(
        num_scalar_prefetch=0,
        grid=(B, nq, nq),
        in_specs=[
            pl.BlockSpec((1, blk, d), lambda b, qi, ki: (b, qi, 0)),   # Q
            pl.BlockSpec((1, blk, d), lambda b, qi, ki: (b, ki, 0)),   # K
            pl.BlockSpec((1, blk, d), lambda b, qi, ki: (b, ki, 0)),   # V
            pl.BlockSpec((r_rows, d), lambda b, qi, ki: (0, 0)),       # rel emb
        ],
        out_specs=pl.BlockSpec((1, blk, d), lambda b, qi, ki: (b, qi, 0)),
        scratch_shapes=scratch,
    )
    return pl.pallas_call(
        functools.partial(_full_kernel, **kern_kwargs),
        out_shape=out_shape,
        grid_spec=grid_spec,
        compiler_params=pltpu.CompilerParams(
            dimension_semantics=("parallel", "parallel", "arbitrary"),
            vmem_limit_bytes=vmem_limit),
    )(q, k, v, r_pad)


def reference_forward(x, wq, wk, wv, rel_weight, max_len, head_size, mask=True):
    """Pure-JAX mirror of the PyTorch forward (including the skewing trick)."""
    B, L, _ = x.shape
    Q = x @ wq.T
    K = x @ wk.T
    V = x @ wv.T
    scores = jnp.einsum('bld,bmd->blm', Q, K) / math.sqrt(head_size)
    rel_idx = jnp.arange(-L + 1, L) + (max_len - 1)
    R = rel_weight[rel_idx]                                          # (2L-1, d)
    M = jnp.einsum('bld,rd->blr', Q, R)                              # (B, L, 2L-1)
    Mp = jnp.pad(M, ((0, 0), (0, 0), (1, 0)))                        # (B, L, 2L)
    Mr = Mp.reshape(B, -1, L)[:, 1:, :]                              # (B, 2L-1, L)
    S_rel = Mr.reshape(B, L, 2 * L - 1)[:, :, :L]                    # (B, L, L)
    scores = scores + S_rel
    if mask:
        tri = jnp.tril(jnp.ones((L, L), scores.dtype))
        scores = jnp.where(tri == 0, -jnp.inf, scores)
    wei = jax.nn.softmax(scores, axis=-1)
    return jnp.einsum('blm,bmd->bld', wei, V)


if __name__ == "__main__":
    B, L, n_embd, head_size, max_len = 2, 16, 32, 16, 16

    key = jax.random.PRNGKey(0)
    kx, kq, kk, kv_key, kr = jax.random.split(key, 5)
    x = jax.random.normal(kx, (B, L, n_embd), jnp.float32)

    bound = 1.0 / math.sqrt(n_embd)
    wq = jax.random.uniform(kq, (head_size, n_embd), jnp.float32, -bound, bound)
    wk = jax.random.uniform(kk, (head_size, n_embd), jnp.float32, -bound, bound)
    wv = jax.random.uniform(kv_key, (head_size, n_embd), jnp.float32, -bound, bound)
    rel_weight = jax.random.normal(kr, (2 * max_len - 1, head_size), jnp.float32)

    ref = reference_forward(x, wq, wk, wv, rel_weight, max_len, head_size, mask=True)
    ref_nm = reference_forward(x, wq, wk, wv, rel_weight, max_len, head_size, mask=False)

    # 1) masked, f32 strict-check path, 2x2 tiles -> 3-step triangular schedule
    #    (exercises init/finalize, diagonal masking and the SMEM tile maps).
    out = relative_attention_head(x, wq, wk, wv, rel_weight, max_len, head_size,
                                  mask=True, block_size=8,
                                  compute_dtype=jnp.float32)
    out = jax.block_until_ready(out)
    assert out.shape == (B, L, head_size)
    err = float(jnp.max(jnp.abs(out - ref)))
    assert jnp.allclose(out, ref, atol=1e-2, rtol=1e-2), f"masked f32 max err={err}"

    # 2) unmasked, f32, rectangular grid (all kv tiles incl. future windows).
    out_nm = relative_attention_head(x, wq, wk, wv, rel_weight, max_len, head_size,
                                     mask=False, block_size=8,
                                     compute_dtype=jnp.float32)
    out_nm = jax.block_until_ready(out_nm)
    err_nm = float(jnp.max(jnp.abs(out_nm - ref_nm)))
    assert jnp.allclose(out_nm, ref_nm, atol=1e-2, rtol=1e-2), f"unmasked f32 max err={err_nm}"

    # 3) masked, production default (bf16 MXU operands, f32 acc / f32 softmax).
    out_bf = relative_attention_head(x, wq, wk, wv, rel_weight, max_len, head_size,
                                     mask=True, block_size=8)
    out_bf = jax.block_until_ready(out_bf)
    err_bf = float(jnp.max(jnp.abs(out_bf - ref)))
    assert jnp.allclose(out_bf, ref, atol=8e-2, rtol=8e-2), f"masked bf16 max err={err_bf}"

    # 4) masked, automatic block size (falls back to blk=L=16 -> nq=1 path).
    out_1t = relative_attention_head(x, wq, wk, wv, rel_weight, max_len, head_size,
                                     mask=True)
    out_1t = jax.block_until_ready(out_1t)
    err_1t = float(jnp.max(jnp.abs(out_1t - ref)))
    assert jnp.allclose(out_1t, ref, atol=8e-2, rtol=8e-2), f"masked bf16 blk=L max err={err_1t}"

    print("KERNEL_OK")
</pallas_src>

<mosaic_0001>
module attributes {stable_mosaic.version = 11 : i64} {
  func.func @_causal_kernel(%arg0: i32, %arg1: i32, %arg2: memref<3xi32, #tpu.memory_space<smem>>, %arg3: memref<3xi32, #tpu.memory_space<smem>>, %arg4: memref<1x8x16xf32, #tpu.memory_space<vmem>>, %arg5: memref<1x8x16xf32, #tpu.memory_space<vmem>>, %arg6: memref<1x8x16xf32, #tpu.memory_space<vmem>>, %arg7: memref<144x16xf32, #tpu.memory_space<vmem>>, %arg8: memref<1x8x16xf32, #tpu.memory_space<vmem>>, %arg9: memref<8x1xf32, #tpu.memory_space<vmem>>, %arg10: memref<8x1xf32, #tpu.memory_space<vmem>>, %arg11: memref<8x16xf32, #tpu.memory_space<vmem>>) attributes {dimension_semantics = [#tpu.dimension_semantics<parallel>, #tpu.dimension_semantics<arbitrary>], iteration_bounds = array<i64: 2, 3>, scalar_prefetch = 2 : i64, scratch_operands = 3 : i64, tpu.core_type = #tpu.core_type<tc>, window_params = [{transform_indices = @transform_0, window_bounds = array<i64: 1, 8, 16>}, {transform_indices = @transform_1, window_bounds = array<i64: 1, 8, 16>}, {transform_indices = @transform_2, window_bounds = array<i64: 1, 8, 16>}, {pipeline_mode = #tpu.pipeline_mode<synchronous>, transform_indices = @transform_3, window_bounds = array<i64: 144, 16>}, {transform_indices = @transform_4, window_bounds = array<i64: 1, 8, 16>}]} {
    %0 = arith.index_cast %arg1 : i32 to index
    %1 = memref.load %arg2[%0] : memref<3xi32, #tpu.memory_space<smem>>
    %2 = arith.index_cast %arg1 : i32 to index
    %3 = memref.load %arg3[%2] : memref<3xi32, #tpu.memory_space<smem>>
    %c0_i32 = arith.constant 0 : i32
    %4 = arith.cmpi eq, %3, %c0_i32 : i32
    %5 = arith.extui %4 : i1 to i32
    %c0_i32_0 = arith.constant 0 : i32
    %6 = arith.cmpi ne, %5, %c0_i32_0 : i32
    scf.if %6 {
      %cst_31 = arith.constant -1.000000e+30 : f32
      %60 = vector.broadcast %cst_31 : f32 to vector<8x1xf32>
      %c0_32 = arith.constant 0 : index
      %c0_33 = arith.constant 0 : index
      %61 = vector.load %arg9[%c0_32, %c0_33] : memref<8x1xf32, #tpu.memory_space<vmem>>, vector<8x1xf32>
      tpu.vector_store %arg9[%c0_32, %c0_33], %60 {strides = array<i32>} : memref<8x1xf32, #tpu.memory_space<vmem>>, vector<8x1xf32>,
      %cst_34 = arith.constant 0.000000e+00 : f32
      %62 = vector.broadcast %cst_34 : f32 to vector<8x1xf32>
      %c0_35 = arith.constant 0 : index
      %c0_36 = arith.constant 0 : index
      %63 = vector.load %arg10[%c0_35, %c0_36] : memref<8x1xf32, #tpu.memory_space<vmem>>, vector<8x1xf32>
      tpu.vector_store %arg10[%c0_35, %c0_36], %62 {strides = array<i32>} : memref<8x1xf32, #tpu.memory_space<vmem>>, vector<8x1xf32>,
      %cst_37 = arith.constant 0.000000e+00 : f32
      %64 = vector.broadcast %cst_37 : f32 to vector<8x16xf32>
      %c0_38 = arith.constant 0 : index
      %c0_39 = arith.constant 0 : index
      %65 = vector.load %arg11[%c0_38, %c0_39] : memref<8x16xf32, #tpu.memory_space<vmem>>, vector<8x16xf32>
      tpu.vector_store %arg11[%c0_38, %c0_39], %64 {strides = array<i32>} : memref<8x16xf32, #tpu.memory_space<vmem>>, vector<8x16xf32>,
    } else {
    }
    %c0 = arith.constant 0 : index
    %c0_1 = arith.constant 0 : index
    %c0_2 = arith.constant 0 : index
    %7 = vector.load %arg4[%c0, %c0_1, %c0_2] : memref<1x8x16xf32, #tpu.memory_space<vmem>>, vector<1x8x16xf32>
    %8 = vector.shape_cast %7 : vector<1x8x16xf32> to vector<8x16xf32>
    %c0_3 = arith.constant 0 : index
    %c0_4 = arith.constant 0 : index
    %c0_5 = arith.constant 0 : index
    %9 = vector.load %arg5[%c0_3, %c0_4, %c0_5] : memref<1x8x16xf32, #tpu.memory_space<vmem>>, vector<1x8x16xf32>
    %10 = vector.shape_cast %9 : vector<1x8x16xf32> to vector<8x16xf32>
    %cst = arith.constant dense<0.000000e+00> : vector<8x8xf32>
    %11 = tpu.matmul %8, %10, %cst {dimension_numbers = #tpu.dot_dimension_numbers<[1], [1], [0], [0], [0, 0, 1, 0], [], []>} : vector<8x16xf32>, vector<8x16xf32>, vector<8x8xf32> -> vector<8x8xf32>
    %12 = arith.subi %3, %1 : i32
    %c8_i32 = arith.constant 8 : i32
    %13 = arith.muli %12, %c8_i32 : i32
    %c8_i32_6 = arith.constant 8 : i32
    %14 = arith.addi %13, %c8_i32_6 : i32
    %15 = tpu.assume_multiple %14, 8 : i32
    %16 = arith.index_cast %15 : i32 to index
    %c0_7 = arith.constant 0 : index
    %17 = vector.load %arg7[%16, %c0_7] : memref<144x16xf32, #tpu.memory_space<vmem>>, vector<128x16xf32>
    %cst_8 = arith.constant dense<0.000000e+00> : vector<8x128xf32>
    %18 = tpu.matmul %8, %17, %cst_8 {dimension_numbers = #tpu.dot_dimension_numbers<[1], [1], [0], [0], [0, 0, 1, 0], [], []>} : vector<8x16xf32>, vector<128x16xf32>, vector<8x128xf32> -> vector<8x128xf32>
    %c120_i32 = arith.constant 120 : i32
    %19 = tpu.dynamic_rotate %18 by %c120_i32 dim 1 {stride = 1 : si32, stride_dimension = 0 : si32} : vector<8x128xf32>, i32 -> vector<8x128xf32>
    %20 = vector.extract_strided_slice %19 {offsets = [0, 0], sizes = [8, 8], strides = [1, 1]} : vector<8x128xf32> to vector<8x8xf32>
    %21 = arith.addf %11, %20 : vector<8x8xf32>
    %c8_i32_9 = arith.constant 8 : i32
    %22 = arith.muli %1, %c8_i32_9 : i32
    %23 = tpu.iota {dimensions = array<i32: 0>} : vector<8x8xi32>
    %24 = vector.broadcast %22 : i32 to vector<8x8xi32>
    %25 = arith.addi %24, %23 : vector<8x8xi32>
    %c8_i32_10 = arith.constant 8 : i32
    %26 = arith.muli %3, %c8_i32_10 : i32
    %27 = tpu.iota {dimensions = array<i32: 1>} : vector<8x8xi32>
    %28 = vector.broadcast %26 : i32 to vector<8x8xi32>
    %29 = arith.addi %28, %27 : vector<8x8xi32>
    %30 = arith.cmpi sle, %29, %25 : vector<8x8xi32>
    %cst_11 = arith.constant -1.000000e+30 : f32
    %31 = vector.broadcast %cst_11 : f32 to vector<8x8xf32>
    %32 = arith.select %30, %21, %31 : vector<8x8xi1>, vector<8x8xf32>
    %c0_12 = arith.constant 0 : index
    %c0_13 = arith.constant 0 : index
    %c0_14 = arith.constant 0 : index
    %33 = vector.load %arg6[%c0_12, %c0_13, %c0_14] : memref<1x8x16xf32, #tpu.memory_space<vmem>>, vector<1x8x16xf32>
    %34 = vector.shape_cast %33 : vector<1x8x16xf32> to vector<8x16xf32>
    %c0_15 = arith.constant 0 : index
    %c0_16 = arith.constant 0 : index
    %35 = vector.load %arg9[%c0_15, %c0_16] : memref<8x1xf32, #tpu.memory_space<vmem>>, vector<8x1xf32>
    %cst_17 = arith.constant dense<0xFF800000> : vector<8xf32>
    %36 = vector.multi_reduction <maximumf>, %32, %cst_17 [1] : vector<8x8xf32> to vector<8xf32>
    %37 = vector.shape_cast %36 : vector<8xf32> to vector<8x1xf32>
    %38 = arith.maximumf %35, %37 : vector<8x1xf32>
    %39 = arith.subf %35, %38 : vector<8x1xf32>
    %40 = math.exp %39 : vector<8x1xf32>
    %41 = vector.broadcast %38 : vector<8x1xf32> to vector<8x8xf32>
    %42 = arith.subf %32, %41 : vector<8x8xf32>
    %43 = math.exp %42 : vector<8x8xf32>
    %c0_18 = arith.constant 0 : index
    %c0_19 = arith.constant 0 : index
    %44 = vector.load %arg10[%c0_18, %c0_19] : memref<8x1xf32, #tpu.memory_space<vmem>>, vector<8x1xf32>
    %45 = arith.mulf %40, %44 : vector<8x1xf32>
    %cst_20 = arith.constant dense<0.000000e+00> : vector<8xf32>
    %46 = vector.multi_reduction <add>, %43, %cst_20 [1] : vector<8x8xf32> to vector<8xf32>
    %47 = vector.shape_cast %46 : vector<8xf32> to vector<8x1xf32>
    %48 = arith.addf %45, %47 : vector<8x1xf32>
    %c0_21 = arith.constant 0 : index
    %c0_22 = arith.constant 0 : index
    %49 = vector.load %arg10[%c0_21, %c0_22] : memref<8x1xf32, #tpu.memory_space<vmem>>, vector<8x1xf32>
    tpu.vector_store %arg10[%c0_21, %c0_22], %48 {strides = array<i32>} : memref<8x1xf32, #tpu.memory_space<vmem>>, vector<8x1xf32>,
    %c0_23 = arith.constant 0 : index
    %c0_24 = arith.constant 0 : index
    %50 = vector.load %arg11[%c0_23, %c0_24] : memref<8x16xf32, #tpu.memory_space<vmem>>, vector<8x16xf32>
    %51 = vector.broadcast %40 : vector<8x1xf32> to vector<8x16xf32>
    %52 = arith.mulf %51, %50 : vector<8x16xf32>
    %cst_25 = arith.constant dense<0.000000e+00> : vector<8x16xf32>
    %53 = tpu.matmul %43, %34, %cst_25 {dimension_numbers = #tpu.dot_dimension_numbers<[1], [0], [0], [1], [0, 0, 1, 1], [], []>} : vector<8x8xf32>, vector<8x16xf32>, vector<8x16xf32> -> vector<8x16xf32>
    %54 = arith.addf %52, %53 : vector<8x16xf32>
    %c0_26 = arith.constant 0 : index
    %c0_27 = arith.constant 0 : index
    %55 = vector.load %arg11[%c0_26, %c0_27] : memref<8x16xf32, #tpu.memory_space<vmem>>, vector<8x16xf32>
    tpu.vector_store %arg11[%c0_26, %c0_27], %54 {strides = array<i32>} : memref<8x16xf32, #tpu.memory_space<vmem>>, vector<8x16xf32>,
    %c0_28 = arith.constant 0 : index
    %c0_29 = arith.constant 0 : index
    %56 = vector.load %arg9[%c0_28, %c0_29] : memref<8x1xf32, #tpu.memory_space<vmem>>, vector<8x1xf32>
    tpu.vector_store %arg9[%c0_28, %c0_29], %38 {strides = array<i32>} : memref<8x1xf32, #tpu.memory_space<vmem>>, vector<8x1xf32>,
    %57 = arith.cmpi eq, %3, %1 : i32
    %58 = arith.extui %57 : i1 to i32
    %c0_i32_30 = arith.constant 0 : i32
    %59 = arith.cmpi ne, %58, %c0_i32_30 : i32
    scf.if %59 {
      %c0_31 = arith.constant 0 : index
      %c0_32 = arith.constant 0 : index
      %60 = vector.load %arg10[%c0_31, %c0_32] : memref<8x1xf32, #tpu.memory_space<vmem>>, vector<8x1xf32>
      %61 = tpu.reciprocal %60 : vector<8x1xf32> -> vector<8x1xf32>
      %c0_33 = arith.constant 0 : index
      %c0_34 = arith.constant 0 : index
      %62 = vector.load %arg11[%c0_33, %c0_34] : memref<8x16xf32, #tpu.memory_space<vmem>>, vector<8x16xf32>
      %63 = vector.broadcast %61 : vector<8x1xf32> to vector<8x16xf32>
      %64 = arith.mulf %62, %63 : vector<8x16xf32>
      %c0_35 = arith.constant 0 : index
      %c0_36 = arith.constant 0 : index
      %c0_37 = arith.constant 0 : index
      %65 = vector.load %arg8[%c0_35, %c0_36, %c0_37] : memref<1x8x16xf32, #tpu.memory_space<vmem>>, vector<1x8x16xf32>
      %66 = vector.shape_cast %65 : vector<1x8x16xf32> to vector<8x16xf32>
      %67 = vector.shape_cast %64 : vector<8x16xf32> to vector<1x8x16xf32>
      tpu.vector_store %arg8[%c0_35, %c0_36, %c0_37], %67 {strides = array<i32>} : memref<1x8x16xf32, #tpu.memory_space<vmem>>, vector<1x8x16xf32>,
    } else {
    }
    return
  }
  func.func @transform_0(%arg0: i32, %arg1: i32, %arg2: memref<3xi32, #tpu.memory_space<smem>>, %arg3: memref<3xi32, #tpu.memory_space<smem>>) -> (i32, i32, i32) {
    %0 = arith.index_cast %arg1 : i32 to index
    %1 = memref.load %arg2[%0] : memref<3xi32, #tpu.memory_space<smem>>
    %c0_i32 = arith.constant 0 : i32
    %c0_i32_0 = arith.constant 0 : i32
    return %arg0, %1, %c0_i32 : i32, i32, i32
  }
  func.func @transform_1(%arg0: i32, %arg1: i32, %arg2: memref<3xi32, #tpu.memory_space<smem>>, %arg3: memref<3xi32, #tpu.memory_space<smem>>) -> (i32, i32, i32) {
    %0 = arith.index_cast %arg1 : i32 to index
    %1 = memref.load %arg3[%0] : memref<3xi32, #tpu.memory_space<smem>>
    %c0_i32 = arith.constant 0 : i32
    %c0_i32_0 = arith.constant 0 : i32
    return %arg0, %1, %c0_i32 : i32, i32, i32
  }
  func.func @transform_2(%arg0: i32, %arg1: i32, %arg2: memref<3xi32, #tpu.memory_space<smem>>, %arg3: memref<3xi32, #tpu.memory_space<smem>>) -> (i32, i32, i32) {
    %0 = arith.index_cast %arg1 : i32 to index
    %1 = memref.load %arg3[%0] : memref<3xi32, #tpu.memory_space<smem>>
    %c0_i32 = arith.constant 0 : i32
    %c0_i32_0 = arith.constant 0 : i32
    return %arg0, %1, %c0_i32 : i32, i32, i32
  }
  func.func @transform_3(%arg0: i32, %arg1: i32, %arg2: memref<3xi32, #tpu.memory_space<smem>>, %arg3: memref<3xi32, #tpu.memory_space<smem>>) -> (i32, i32) {
    %c0_i32 = arith.constant 0 : i32
    %c0_i32_0 = arith.constant 0 : i32
    %c0_i32_1 = arith.constant 0 : i32
    return %c0_i32, %c0_i32_0 : i32, i32
  }
  func.func @transform_4(%arg0: i32, %arg1: i32, %arg2: memref<3xi32, #tpu.memory_space<smem>>, %arg3: memref<3xi32, #tpu.memory_space<smem>>) -> (i32, i32, i32) {
    %0 = arith.index_cast %arg1 : i32 to index
    %1 = memref.load %arg2[%0] : memref<3xi32, #tpu.memory_space<smem>>
    %c0_i32 = arith.constant 0 : i32
    %c0_i32_0 = arith.constant 0 : i32
    return %arg0, %1, %c0_i32 : i32, i32, i32
  }
}

</mosaic_0001>

<llo_original>
// kernel: tpu_custom_call.1
$region0: #{tpu_custom_call.1}
  #allocation0 [shape = 'u32[]', space=smem, size = 0x4, offset = 0x4, fixed_abs, tag = 'smem constant byte address 0x4 - core index']
  #allocation1 [shape = 'u32[144,128]{1,0:T(1,128)}', space=vmem, size = 0x12000, scoped, tag = 'internal scratch']
  #allocation2 [shape = 'f32[8,1]{1,0:T(8,128)}', space=vmem, size = 0x1000, scoped, tag = 'scratch operand']
  #allocation3 [shape = 'f32[8,1]{1,0:T(8,128)}', space=vmem, size = 0x1000, scoped, tag = 'scratch operand']
  #allocation4 [shape = 'f32[8,16]{1,0:T(8,128)}', space=vmem, size = 0x1000, scoped, tag = 'scratch operand']
  #allocation5 [shape = 's32[1]{0}', space=sflag, size = 0x4, scoped, tag = 'scoped memory for tpu_custom_call.1']
  #allocation6 [shape = 'u8[512]{0}', space=smem, size = 0x200, scoped, tag = 'prefetched SMEM operand 0']
  #allocation7 [shape = 'u8[512]{0}', space=smem, size = 0x200, scoped, tag = 'prefetched SMEM operand 1']
  %s0 = inlined_call_operand.vmem [shape: s32[3], index: 0, kind: input, shape index: {}]
  %s1 = inlined_call_operand.vmem [shape: s32[3], index: 1, kind: input, shape index: {}]
  %s2 = inlined_call_operand.vmem [shape: f32[2,16,16], index: 2, kind: input, shape index: {}]
  %s3 = inlined_call_operand.vmem [shape: f32[2,16,16], index: 3, kind: input, shape index: {}]
  %s4 = inlined_call_operand.vmem [shape: f32[2,16,16], index: 4, kind: input, shape index: {}]
  %s5 = inlined_call_operand.vmem [shape: f32[144,16], index: 5, kind: input, shape index: {}]
  %s6 = inlined_call_operand.hbm [shape: f32[2,16,16], index: 6, kind: output, shape index: {}]
  %s7 = sld [smem:[#allocation0]]
  $region57: #{tpu_custom_call.1} parent=0
    _
  %s9 = ssub.s32 1, %s7
  %s10 = scalar_select 0, %s9, %s7
  %s11 = sshll.u32 %s0, 4
  %s12 = int_to_ptr.vmem [resolvable:$true] %s11
  %14 = dma.vmem_to_smem %s12, 16, [#allocation6], [#allocation5]
  %s15 = sshll.u32 %s1, 4
  %s16 = int_to_ptr.vmem [resolvable:$true] %s15
  %18 = dma.vmem_to_smem %s16, 16, [#allocation7], [#allocation5]
  %19 = dma.done [#allocation5], 32
  %20 = sfence
  $region1: #{tpu_custom_call.1} parent=0
    #allocation8 [shape = 'u8[8192]{0}', space=vmem, size = 0x2000, scoped, tag = 'output window, operand 0']
    #allocation9 [shape = 's32[2]{0}', space=sflag, size = 0x8, scoped, tag = 'scoped memory for tpu_custom_call.1']
    %21 = vsyncpa [#allocation9], 0
    %s22 = scalar_lea.sflag [#allocation9], 1
    %23 = vsyncpa %s22, 0
    loop: start=0, step=1, limit=8
    $region2: #{tpu_custom_call.1} parent=1 // loop_pre_header
      _
    $region3: #{tpu_custom_call.1} parent=1 // loop_header
      %s25 = sphi 0, %s29
      %p26 = scmp.ge.s32.totalorder %s25, 8
      %s32 = sphi 0, %s44
      %s33 = sphi 0, %s40
      %s34 = sphi 0, %s32
      %s35 = sphi 0, %s33
      %s36 = sphi 0, %s34
      %s37 = sphi 0, %s35
      %s51 = sphi 0, %s53
      %s54 = sphi 0, %s51
      %s55 = sphi 0, %s54
      %s71 = sphi 0, %s55
      %s81 = sphi 0, %s83
      %s84 = sphi 0, %s81
      %s85 = sphi 0, %s84
      %s101 = sphi 0, %s85
      %s111 = sphi 0, %s113
      %s114 = sphi 0, %s111
      %s115 = sphi 0, %s114
      %s131 = sphi 0, %s115
      %s135 = sphi 0, %s135
      %s137 = sphi 0, %s135
      %s138 = sphi 0, %s137
      %s152 = sphi 0, %s138
      %s162 = sphi 0, %s164
      %s165 = sphi 0, %s162
      %s166 = sphi 0, %s165
      %s182 = sphi 0, %s166
    $region4: #{tpu_custom_call.1} parent=1 // loop_header_branch
      %28 = sbr.rel (%p26) target = $region8
    $region5: #{tpu_custom_call.1} parent=1 // loop_body
      %s30 = ssub.s32 %s25, 1
      %s31 = ssub.s32 %s25, 2
      %s38 = sadd.s32 1, %s33
      %p39 = scmp.ge.s32.totalorder %s38, 3
      %s40 = scalar_select %p39, 0, %s38
      %s41 = sadd.s32 1, %s32
      %s42 = scalar_select %p39, %s41, %s32
      %p43 = scmp.ge.s32.totalorder %s42, 2
      %s44 = scalar_select %p43, 0, %s42
      %s45 = sld [smem:[#allocation6 + %s33]]
      %s46 = sld [smem:[#allocation6 + %s40]]
      %s47 = ssub.s32 %s32, %s44
      %s48 = ssub.s32 %s45, %s46
      %s49 = sor.u32 %s47, %s48
      %p50 = scmp.eq.s32.totalorder %s49, 0
      %s52 = sadd.s32 %s51, 1
      %s53 = scalar_select %p50, %s51, %s52
      %p56 = pneg %p50
      %p57 = scmp.eq.s32.totalorder %s25, 5
      %p58 = por %p56, %p57
      %p59 = scmp.ne.s32.totalorder %s51, %s54
      %p60 = scmp.eq.s32.totalorder %s25, 0
      %p61 = por %p59, %p60
      %p62 = scmp.ne.s32.totalorder %s51, %s54
      %p63 = scmp.eq.s32.totalorder %s30, 5
      %p64 = por %p62, %p63
      %p65 = scmp.ne.s32.totalorder %s54, %s55
      %p66 = scmp.eq.s32.totalorder %s30, 0
      %p67 = por %p65, %p66
      %p68 = scmp.ne.s32.totalorder %s54, %s55
      %p69 = scmp.eq.s32.totalorder %s31, 5
      %p70 = por %p68, %p69
      %p72 = scmp.ne.s32.totalorder %s55, %s71
      %p73 = scmp.eq.s32.totalorder %s31, 0
      %p74 = por %p72, %p73
      %s75 = sld [smem:[#allocation7 + %s33]]
      %s76 = sld [smem:[#allocation7 + %s40]]
      %s77 = ssub.s32 %s32, %s44
      %s78 = ssub.s32 %s75, %s76
      %s79 = sor.u32 %s77, %s78
      %p80 = scmp.eq.s32.totalorder %s79, 0
      %s82 = sadd.s32 %s81, 1
      %s83 = scalar_select %p80, %s81, %s82
      %p86 = pneg %p80
      %p87 = scmp.eq.s32.totalorder %s25, 5
      %p88 = por %p86, %p87
      %p89 = scmp.ne.s32.totalorder %s81, %s84
      %p90 = scmp.eq.s32.totalorder %s25, 0
      %p91 = por %p89, %p90
      %p92 = scmp.ne.s32.totalorder %s81, %s84
      %p93 = scmp.eq.s32.totalorder %s30, 5
      %p94 = por %p92, %p93
      %p95 = scmp.ne.s32.totalorder %s84, %s85
      %p96 = scmp.eq.s32.totalorder %s30, 0
      %p97 = por %p95, %p96
      %p98 = scmp.ne.s32.totalorder %s84, %s85
      %p99 = scmp.eq.s32.totalorder %s31, 5
      %p100 = por %p98, %p99
      %p102 = scmp.ne.s32.totalorder %s85, %s101
      %p103 = scmp.eq.s32.totalorder %s31, 0
      %p104 = por %p102, %p103
      %s105 = sld [smem:[#allocation7 + %s33]]
      %s106 = sld [smem:[#allocation7 + %s40]]
      %s107 = ssub.s32 %s32, %s44
      %s108 = ssub.s32 %s105, %s106
      %s109 = sor.u32 %s107, %s108
      %p110 = scmp.eq.s32.totalorder %s109, 0
      %s112 = sadd.s32 %s111, 1
      %s113 = scalar_select %p110, %s111, %s112
      %p116 = pneg %p110
      %p117 = scmp.eq.s32.totalorder %s25, 5
      %p118 = por %p116, %p117
      %p119 = scmp.ne.s32.totalorder %s111, %s114
      %p120 = scmp.eq.s32.totalorder %s25, 0
      %p121 = por %p119, %p120
      %p122 = scmp.ne.s32.totalorder %s111, %s114
      %p123 = scmp.eq.s32.totalorder %s30, 5
      %p124 = por %p122, %p123
      %p125 = scmp.ne.s32.totalorder %s114, %s115
      %p126 = scmp.eq.s32.totalorder %s30, 0
      %p127 = por %p125, %p126
      %p128 = scmp.ne.s32.totalorder %s114, %s115
      %p129 = scmp.eq.s32.totalorder %s31, 5
      %p130 = por %p128, %p129
      %p132 = scmp.ne.s32.totalorder %s115, %s131
      %p133 = scmp.eq.s32.totalorder %s31, 0
      %p134 = por %p132, %p133
      %s136 = sadd.s32 %s135, 1
      %p139 = scmp.eq.s32.totalorder %s25, 5
      %p140 = scmp.ne.s32.totalorder %s135, %s137
      %p141 = scmp.eq.s32.totalorder %s25, 0
      %p142 = por %p140, %p141
      %p143 = scmp.ne.s32.totalorder %s135, %s137
      %p144 = scmp.eq.s32.totalorder %s30, 5
      %p145 = por %p143, %p144
      %p146 = scmp.ne.s32.totalorder %s137, %s138
      %p147 = scmp.eq.s32.totalorder %s30, 0
      %p148 = por %p146, %p147
      %p149 = scmp.ne.s32.totalorder %s137, %s138
      %p150 = scmp.eq.s32.totalorder %s31, 5
      %p151 = por %p149, %p150
      %p153 = scmp.ne.s32.totalorder %s138, %s152
      %p154 = scmp.eq.s32.totalorder %s31, 0
      %p155 = por %p153, %p154
      %s156 = sld [smem:[#allocation6 + %s33]]
      %s157 = sld [smem:[#allocation6 + %s40]]
      %s158 = ssub.s32 %s32, %s44
      %s159 = ssub.s32 %s156, %s157
      %s160 = sor.u32 %s158, %s159
      %p161 = scmp.eq.s32.totalorder %s160, 0
      %s163 = sadd.s32 %s162, 1
      %s164 = scalar_select %p161, %s162, %s163
      %p167 = pneg %p161
      %p168 = scmp.eq.s32.totalorder %s25, 5
      %p169 = por %p167, %p168
      %p170 = scmp.ne.s32.totalorder %s162, %s165
      %p171 = scmp.eq.s32.totalorder %s25, 0
      %p172 = por %p170, %p171
      %p173 = scmp.ne.s32.totalorder %s162, %s165
      %p174 = scmp.eq.s32.totalorder %s30, 5
      %p175 = por %p173, %p174
      %p176 = scmp.ne.s32.totalorder %s165, %s166
      %p177 = scmp.eq.s32.totalorder %s30, 0
      %p178 = por %p176, %p177
      %p179 = scmp.ne.s32.totalorder %s165, %s166
      %p180 = scmp.eq.s32.totalorder %s31, 5
      %p181 = por %p179, %p180
      %p183 = scmp.ne.s32.totalorder %s166, %s182
      %p184 = scmp.eq.s32.totalorder %s31, 0
      %p185 = por %p183, %p184
      %p186 = scmp.le.s32.totalorder 1, %s25
      %p187 = scmp.lt.s32.totalorder %s25, 7
      %p188 = pnand %p186, %p187
      %p189 = pneg %p188
      // Predicated region
      $region9: #{tpu_custom_call.1} parent=5 // pred_check
        _
      $region10: #{tpu_custom_call.1} parent=5 // pred_check_branch
        %191 = sbr.rel (%p188) target = $region12
      $region11: #{tpu_custom_call.1} parent=5 // pred_region
        %s192 = ssub.s32 %s25, 1
        // Predicated region
        $region13: #{tpu_custom_call.1} parent=11 // pred_check
          %p193 = pneg %p148
        $region14: #{tpu_custom_call.1} parent=11 // pred_check_branch
          %195 = sbr.rel (%p193) target = $region16
        $region15: #{tpu_custom_call.1} parent=11 // pred_region
          _
        $region16: #{tpu_custom_call.1} parent=11 // pred_fallthru
          _
      $region12: #{tpu_custom_call.1} parent=5 // pred_fallthru
        _
      %p196 = scmp.lt.s32.totalorder %s25, 6
      // Predicated region
      $region17: #{tpu_custom_call.1} parent=5 // pred_check
        %p197 = pneg %p196
      $region18: #{tpu_custom_call.1} parent=5 // pred_check_branch
        %199 = sbr.rel (%p197) target = $region20
      $region19: #{tpu_custom_call.1} parent=5 // pred_region
        // Predicated region
        $region21: #{tpu_custom_call.1} parent=19 // pred_check
          %p200 = pneg %p61
        $region22: #{tpu_custom_call.1} parent=19 // pred_check_branch
          %202 = sbr.rel (%p200) target = $region24
        $region23: #{tpu_custom_call.1} parent=19 // pred_region
          %s203 = sld [smem:[#allocation6 + %s33]]
          %p204 = scmp.lt.s32.totalorder %s32, 1
          %s205 = scalar_select %p204, %s32, 1
          %p206 = scmp.lt.s32.totalorder %s203, 1
          %s207 = scalar_select %p206, %s203, 1
          %s208 = smul.addr %s205, 2
          %s209 = sadd.s32 %s207, %s208
          %s210 = smul.addr %s209, 8
          %s211 = scalar_lea.vmem %s2, %s210
          %s212 = sld [smem:[#allocation6 + %s33]]
        $region24: #{tpu_custom_call.1} parent=19 // pred_fallthru
          _
        // Predicated region
        $region25: #{tpu_custom_call.1} parent=19 // pred_check
          %p213 = pneg %p91
        $region26: #{tpu_custom_call.1} parent=19 // pred_check_branch
          %215 = sbr.rel (%p213) target = $region28
        $region27: #{tpu_custom_call.1} parent=19 // pred_region
          %s216 = sld [smem:[#allocation7 + %s33]]
          %p217 = scmp.lt.s32.totalorder %s32, 1
          %s218 = scalar_select %p217, %s32, 1
          %p219 = scmp.lt.s32.totalorder %s216, 1
          %s220 = scalar_select %p219, %s216, 1
          %s221 = smul.addr %s218, 2
          %s222 = sadd.s32 %s220, %s221
          %s223 = smul.addr %s222, 8
          %s224 = scalar_lea.vmem %s3, %s223
          %s225 = sld [smem:[#allocation7 + %s33]]
        $region28: #{tpu_custom_call.1} parent=19 // pred_fallthru
          _
        // Predicated region
        $region29: #{tpu_custom_call.1} parent=19 // pred_check
          %p226 = pneg %p121
        $region30: #{tpu_custom_call.1} parent=19 // pred_check_branch
          %228 = sbr.rel (%p226) target = $region32
        $region31: #{tpu_custom_call.1} parent=19 // pred_region
          %s229 = sld [smem:[#allocation7 + %s33]]
          %p230 = scmp.lt.s32.totalorder %s32, 1
          %s231 = scalar_select %p230, %s32, 1
          %p232 = scmp.lt.s32.totalorder %s229, 1
          %s233 = scalar_select %p232, %s229, 1
          %s234 = smul.addr %s231, 2
          %s235 = sadd.s32 %s233, %s234
          %s236 = smul.addr %s235, 8
          %s237 = scalar_lea.vmem %s4, %s236
          %s238 = sld [smem:[#allocation7 + %s33]]
        $region32: #{tpu_custom_call.1} parent=19 // pred_fallthru
          _
      $region20: #{tpu_custom_call.1} parent=5 // pred_fallthru
        _
      %p239 = scmp.le.s32.totalorder 1, %s25
      %p240 = scmp.lt.s32.totalorder %s25, 7
      %p241 = pnand %p239, %p240
      %p242 = pneg %p241
      // Predicated region
      $region33: #{tpu_custom_call.1} parent=5 // pred_check
        _
      $region34: #{tpu_custom_call.1} parent=5 // pred_check_branch
        %244 = sbr.rel (%p241) target = $region36
      $region35: #{tpu_custom_call.1} parent=5 // pred_region
        %s245 = ssub.s32 %s25, 1
        %s246 = sld [smem:[#allocation6 + %s35]]
        %p247 = scmp.lt.s32.totalorder %s34, 1
        %s248 = scalar_select %p247, %s34, 1
        %p249 = scmp.lt.s32.totalorder %s246, 1
        %s250 = scalar_select %p249, %s246, 1
        %s251 = smul.addr %s248, 2
        %s252 = sadd.s32 %s250, %s251
        %s253 = smul.addr %s252, 8
        %s254 = scalar_lea.vmem %s2, %s253
        %p255 = pneg %p67
        %p256 = pneg %p64
        %s257 = sld [smem:[#allocation7 + %s35]]
        %p258 = scmp.lt.s32.totalorder %s34, 1
        %s259 = scalar_select %p258, %s34, 1
        %p260 = scmp.lt.s32.totalorder %s257, 1
        %s261 = scalar_select %p260, %s257, 1
        %s262 = smul.addr %s259, 2
        %s263 = sadd.s32 %s261, %s262
        %s264 = smul.addr %s263, 8
        %s265 = scalar_lea.vmem %s3, %s264
        %p266 = pneg %p97
        %p267 = pneg %p94
        %s268 = sld [smem:[#allocation7 + %s35]]
        %p269 = scmp.lt.s32.totalorder %s34, 1
        %s270 = scalar_select %p269, %s34, 1
        %p271 = scmp.lt.s32.totalorder %s268, 1
        %s272 = scalar_select %p271, %s268, 1
        %s273 = smul.addr %s270, 2
        %s274 = sadd.s32 %s272, %s273
        %s275 = smul.addr %s274, 8
        %s276 = scalar_lea.vmem %s4, %s275
        %p277 = pneg %p127
        %p278 = pneg %p124
        %p279 = pneg %p148
        %p280 = pneg %p145
        %p281 = pneg %p178
        %p282 = pneg %p175
        %s283 = sand.u32 %s165, 1
        %s284 = scalar_lea.sflag [#allocation9], %s283
        %s285 = sand.u32 %s165, 1
        %s286 = smul.addr %s285, 8
        %s287 = scalar_lea.vmem [#allocation8], %s286
        %s288 = sld [smem:[#allocation6 + %s35]]
        %p289 = scmp.lt.s32.totalorder %s34, 1
        %s290 = scalar_select %p289, %s34, 1
        %p291 = scmp.lt.s32.totalorder %s288, 1
        %s292 = scalar_select %p291, %s288, 1
        %s293 = smul.addr %s290, 2
        %s294 = sadd.s32 %s292, %s293
        %s295 = smul.addr %s294, 8
        %s296 = scalar_lea.vmem %s2, %s295
        %s297 = sld [smem:[#allocation6 + %s35]]
        %s298 = sld [smem:[#allocation7 + %s35]]
        %p299 = scmp.lt.s32.totalorder %s34, 1
        %s300 = scalar_select %p299, %s34, 1
        %p301 = scmp.lt.s32.totalorder %s298, 1
        %s302 = scalar_select %p301, %s298, 1
        %s303 = smul.addr %s300, 2
        %s304 = sadd.s32 %s302, %s303
        %s305 = smul.addr %s304, 8
        %s306 = scalar_lea.vmem %s3, %s305
        %s307 = sld [smem:[#allocation7 + %s35]]
        %s308 = sld [smem:[#allocation7 + %s35]]
        %p309 = scmp.lt.s32.totalorder %s34, 1
        %s310 = scalar_select %p309, %s34, 1
        %p311 = scmp.lt.s32.totalorder %s308, 1
        %s312 = scalar_select %p311, %s308, 1
        %s313 = smul.addr %s310, 2
        %s314 = sadd.s32 %s312, %s313
        %s315 = smul.addr %s314, 8
        %s316 = scalar_lea.vmem %s4, %s315
        %s317 = sld [smem:[#allocation7 + %s35]]
        %s318 = sld [smem:[#allocation6 + %s35]]
        %s319 = sld [smem:[#allocation6 + %s35]]
        %s320 = sld [smem:[#allocation7 + %s35]]
        %p321 = scmp.eq.s32.totalorder %s320, 0
        // Predicated region
        $region37: #{tpu_custom_call.1} parent=35 // pred_check
          %p322 = pneg %p321
        $region38: #{tpu_custom_call.1} parent=35 // pred_check_branch
          %324 = sbr.rel (%p322) target = $region40
        $region39: #{tpu_custom_call.1} parent=35 // pred_region
          %vm325 = vcmask 7168
          %326 = vst.msk [vmem:[#allocation2] sm:$0xff] %vm325, -1e+30
          %327 = vst.msk [vmem:[#allocation3] sm:$0xff] %vm325, 0.0
          %vm328 = vcmask 130048
          %329 = vst.msk [vmem:[#allocation4] sm:$0xff] %vm328, 0.0
        $region40: #{tpu_custom_call.1} parent=35 // pred_fallthru
          _
        %v330 = vld [vmem:[%s296] sm:$0xff]
        %v331 = vld [vmem:[%s306] sm:$0xff]
        %s332 = ssub.s32 %s320, %s319
        %s333 = smul.u32 %s332, 8
        %s334 = sadd.s32 %s333, 8
        %s335 = scalar_lea.vmem %s5, %s334
        %v336 = vld [vmem:[%s335] sm:$0xff]
        %v337 = vld [vmem:[%s335 + $0x8] sm:$0xff]
        %v338 = vld [vmem:[%s335 + $0x10] sm:$0xff]
        %v339 = vld [vmem:[%s335 + $0x18] sm:$0xff]
        %v340 = vld [vmem:[%s335 + $0x20] sm:$0xff]
        %v341 = vld [vmem:[%s335 + $0x28] sm:$0xff]
        %v342 = vld [vmem:[%s335 + $0x30] sm:$0xff]
        %v343 = vld [vmem:[%s335 + $0x38] sm:$0xff]
        %v344 = vld [vmem:[%s335 + $0x40] sm:$0xff]
        %v345 = vld [vmem:[%s335 + $0x48] sm:$0xff]
        %v346 = vld [vmem:[%s335 + $0x50] sm:$0xff]
        %v347 = vld [vmem:[%s335 + $0x58] sm:$0xff]
        %v348 = vld [vmem:[%s335 + $0x60] sm:$0xff]
        %v349 = vld [vmem:[%s335 + $0x68] sm:$0xff]
        %v350 = vld [vmem:[%s335 + $0x70] sm:$0xff]
        %v351 = vld [vmem:[%s335 + $0x78] sm:$0xff]
        %vm352 = vcmask 130048
        %v354 = vsel %vm352, %v330, 0
        %v357 = vsel %vm352, %v336, 0
        %v360 = vsel %vm352, %v337, 0
        %v363 = vsel %vm352, %v338, 0
        %v366 = vsel %vm352, %v339, 0
        %v369 = vsel %vm352, %v340, 0
        %v372 = vsel %vm352, %v341, 0
        %v375 = vsel %vm352, %v342, 0
        %v378 = vsel %vm352, %v343, 0
        %v381 = vsel %vm352, %v344, 0
        %v384 = vsel %vm352, %v345, 0
        %v387 = vsel %vm352, %v346, 0
        %v390 = vsel %vm352, %v347, 0
        %v393 = vsel %vm352, %v348, 0
        %v396 = vsel %vm352, %v349, 0
        %v399 = vsel %vm352, %v350, 0
        %v402 = vsel %vm352, %v351, 0
        %404 = vmatprep.subr.mxu0 0.0
        %405 = vmatpush1.xpose.msra.mxu0 %v357
        %406 = vmatprep.subr.mxu0 0.0
        %407 = vmatpush1.xpose.msra.mxu0 %v360
        %408 = vmatprep.subr.mxu0 0.0
        %409 = vmatpush1.xpose.msra.mxu0 %v363
        %410 = vmatprep.subr.mxu0 0.0
        %411 = vmatpush1.xpose.msra.mxu0 %v366
        %412 = vmatprep.subr.mxu0 0.0
        %413 = vmatpush1.xpose.msra.mxu0 %v369
        %414 = vmatprep.subr.mxu0 0.0
        %415 = vmatpush1.xpose.msra.mxu0 %v372
        %416 = vmatprep.subr.mxu0 0.0
        %417 = vmatpush1.xpose.msra.mxu0 %v375
        %418 = vmatprep.subr.mxu0 0.0
        %419 = vmatpush1.xpose.msra.mxu0 %v378
        %420 = vmatprep.subr.mxu0 0.0
        %421 = vmatpush1.xpose.msra.mxu0 %v381
        %422 = vmatprep.subr.mxu0 0.0
        %423 = vmatpush1.xpose.msra.mxu0 %v384
        %424 = vmatprep.subr.mxu0 0.0
        %425 = vmatpush1.xpose.msra.mxu0 %v387
        %426 = vmatprep.subr.mxu0 0.0
        %427 = vmatpush1.xpose.msra.mxu0 %v390
        %428 = vmatprep.subr.mxu0 0.0
        %429 = vmatpush1.xpose.msra.mxu0 %v393
        %430 = vmatprep.subr.mxu0 0.0
        %431 = vmatpush1.xpose.msra.mxu0 %v396
        %432 = vmatprep.subr.mxu0 0.0
        %433 = vmatpush1.xpose.msra.mxu0 %v399
        %434 = vmatprep.subr.mxu0 0.0
        %435 = vmatpush1.xpose.msra.mxu0 %v402
        %436 = vmatprep.subr.mxu0 0.0
        %437 = vmatpush1.xpose.msra.mxu0 0.0
        %438 = vmatprep.subr.mxu0 0.0
        %439 = vmatpush1.xpose.msra.mxu0 0.0
        %440 = vmatprep.subr.mxu0 0.0
        %441 = vmatpush1.xpose.msra.mxu0 0.0
        %442 = vmatprep.subr.mxu0 0.0
        %443 = vmatpush1.xpose.msra.mxu0 0.0
        %444 = vmatprep.subr.mxu0 0.0
        %445 = vmatpush1.xpose.msra.mxu0 0.0
        %446 = vmatprep.subr.mxu0 0.0
        %447 = vmatpush1.xpose.msra.mxu0 0.0
        %448 = vmatprep.subr.mxu0 0.0
        %449 = vmatpush1.xpose.msra.mxu0 0.0
        %450 = vmatprep.subr.mxu0 0.0
        %451 = vmatpush1.xpose.msra.mxu0 0.0
        %452 = vmatprep.subr.mxu0 0.0
        %453 = vmatpush1.xpose.msra.mxu0 0.0
        %454 = vmatprep.subr.mxu0 0.0
        %455 = vmatpush1.xpose.msra.mxu0 0.0
        %456 = vmatprep.subr.mxu0 0.0
        %457 = vmatpush1.xpose.msra.mxu0 0.0
        %458 = vmatprep.subr.mxu0 0.0
        %459 = vmatpush1.xpose.msra.mxu0 0.0
        %460 = vmatprep.subr.mxu0 0.0
        %461 = vmatpush1.xpose.msra.mxu0 0.0
        %462 = vmatprep.subr.mxu0 0.0
        %463 = vmatpush1.xpose.msra.mxu0 0.0
        %464 = vmatprep.subr.mxu0 0.0
        %465 = vmatpush1.xpose.msra.mxu0 0.0
        %466 = vmatprep.subr.mxu0 0.0
        %467 = vmatpush1.xpose.msra.mxu0 0.0
        %468 = vmatprep.mubr.f32.mxu0 0.0
        %469 = vmatmul.mubr.f32.gmra.mrb[0].mxu0 %v354
        %v470 = vpop.f32.mrb[0].mxu0
        %v471 = vadd.f32 0.0, %v470
        %v472 = vpop.f32.mrb[0].mxu0
        %473 = vdwg.mxu0
        %s475 = sor.u32 256, 120
        %476 = vrot.lane.b32.xlu0 %v471, %s475
        %v477 = vpop.permute.xlu0 %476
        %v479 = vsel %vm352, %v331, 0
        %481 = vmatprep.subr.mxu0 0.0
        %482 = vmatpush1.xpose.msra.mxu0 %v479
        %483 = vmatprep.subr.mxu0 0.0
        %484 = vmatpush1.xpose.msra.mxu0 0.0
        %485 = vmatprep.subr.mxu0 0.0
        %486 = vmatpush1.xpose.msra.mxu0 0.0
        %487 = vmatprep.subr.mxu0 0.0
        %488 = vmatpush1.xpose.msra.mxu0 0.0
        %489 = vmatprep.subr.mxu0 0.0
        %490 = vmatpush1.xpose.msra.mxu0 0.0
        %491 = vmatprep.subr.mxu0 0.0
        %492 = vmatpush1.xpose.msra.mxu0 0.0
        %493 = vmatprep.subr.mxu0 0.0
        %494 = vmatpush1.xpose.msra.mxu0 0.0
        %495 = vmatprep.subr.mxu0 0.0
        %496 = vmatpush1.xpose.msra.mxu0 0.0
        %497 = vmatprep.subr.mxu0 0.0
        %498 = vmatpush1.xpose.msra.mxu0 0.0
        %499 = vmatprep.subr.mxu0 0.0
        %500 = vmatpush1.xpose.msra.mxu0 0.0
        %501 = vmatprep.subr.mxu0 0.0
        %502 = vmatpush1.xpose.msra.mxu0 0.0
        %503 = vmatprep.subr.mxu0 0.0
        %504 = vmatpush1.xpose.msra.mxu0 0.0
        %505 = vmatprep.subr.mxu0 0.0
        %506 = vmatpush1.xpose.msra.mxu0 0.0
        %507 = vmatprep.subr.mxu0 0.0
        %508 = vmatpush1.xpose.msra.mxu0 0.0
        %509 = vmatprep.subr.mxu0 0.0
        %510 = vmatpush1.xpose.msra.mxu0 0.0
        %511 = vmatprep.subr.mxu0 0.0
        %512 = vmatpush1.xpose.msra.mxu0 0.0
        %513 = vmatprep.subr.mxu0 0.0
        %514 = vmatpush1.xpose.msra.mxu0 0.0
        %515 = vmatprep.subr.mxu0 0.0
        %516 = vmatpush1.xpose.msra.mxu0 0.0
        %517 = vmatprep.subr.mxu0 0.0
        %518 = vmatpush1.xpose.msra.mxu0 0.0
        %519 = vmatprep.subr.mxu0 0.0
        %520 = vmatpush1.xpose.msra.mxu0 0.0
        %521 = vmatprep.subr.mxu0 0.0
        %522 = vmatpush1.xpose.msra.mxu0 0.0
        %523 = vmatprep.subr.mxu0 0.0
        %524 = vmatpush1.xpose.msra.mxu0 0.0
        %525 = vmatprep.subr.mxu0 0.0
        %526 = vmatpush1.xpose.msra.mxu0 0.0
        %527 = vmatprep.subr.mxu0 0.0
        %528 = vmatpush1.xpose.msra.mxu0 0.0
        %529 = vmatprep.subr.mxu0 0.0
        %530 = vmatpush1.xpose.msra.mxu0 0.0
        %531 = vmatprep.subr.mxu0 0.0
        %532 = vmatpush1.xpose.msra.mxu0 0.0
        %533 = vmatprep.subr.mxu0 0.0
        %534 = vmatpush1.xpose.msra.mxu0 0.0
        %535 = vmatprep.subr.mxu0 0.0
        %536 = vmatpush1.xpose.msra.mxu0 0.0
        %537 = vmatprep.subr.mxu0 0.0
        %538 = vmatpush1.xpose.msra.mxu0 0.0
        %539 = vmatprep.subr.mxu0 0.0
        %540 = vmatpush1.xpose.msra.mxu0 0.0
        %541 = vmatprep.subr.mxu0 0.0
        %542 = vmatpush1.xpose.msra.mxu0 0.0
        %543 = vmatprep.subr.mxu0 0.0
        %544 = vmatpush1.xpose.msra.mxu0 0.0
        %545 = vmatprep.mubr.f32.mxu0 0.0
        %546 = vmatmul.mubr.f32.gmra.mrb[0].mxu0 %v354
        %v547 = vpop.f32.mrb[0].mxu0
        %v548 = vadd.f32 %v477, %v547
        %v549 = vpop.f32.mrb[0].mxu0
        %550 = vdwg.mxu0
        %s551 = smul.u32 %s319, 8
        %v552 = vlaneseq
        %v553 = vshrl.u32 %v552, 7
        %v554 = vstv %s551
        %v555 = vadd.s32 %v554, %v553
        %s556 = smul.u32 %s320, 8
        %v557 = vlaneseq
        %v558 = vand.u32 %v557, 127
        %v559 = vstv %s556
        %v560 = vadd.s32 %v559, %v558
        %vm561 = vcmp.le.s32.totalorder %v560, %v555
        %v562 = vsel %vm561, %v548, -1e+30
        %v563 = vld [vmem:[%s316] sm:$0xff]
        %v564 = vld [vmem:[#allocation2] sm:$0xff]
        %vm565 = vcmask 64512
        %v566 = vsel %vm565, %v562, -inf
        %567 = vmax.xlane.f32.xlu0 %v566
        %v568 = vpop.xlane.xlu0 %567
        %v569 = vmax.f32 %v564, %v568
        %v570 = vsub.f32 %v564, %v569
        %v571 = vmul.f32 %v570, 1.442695
        %v572 = vpow.pop %v571
        %574 = vset.pattern.permute.xlu0 0
        %575 = vperm.xlu0 %574, %v569
        %v576 = vpop.permute.xlu0 %575
        %v578 = vsub.f32 %v562, %v576
        %v579 = vmul.f32 %v578, 1.442695
        %v580 = vpow.pop %v579
        %v581 = vld [vmem:[#allocation3] sm:$0xff]
        %v582 = vmul.f32 %v572, %v581
        %v583 = vsel %vm565, %v580, 0.0
        %584 = vadd.xlane.f32.xlu0 %v583
        %v585 = vpop.xlane.xlu0 %584
        %v586 = vadd.f32 %v582, %v585
        %vm587 = vcmask 7168
        %588 = vst.msk [vmem:[#allocation3] sm:$0xff] %vm587, %v586
        %v589 = vld [vmem:[#allocation4] sm:$0xff]
        %591 = vset.pattern.permute.xlu0 0
        %592 = vperm.xlu0 %591, %v572
        %v593 = vpop.permute.xlu0 %592
        %v595 = vmul.f32 %v593, %v589
        %v597 = vsel %vm565, %v580, 0
        %599 = vmatprep.subr.mxu0 0.0
        %600 = vmatpush1.msra.mxu0 %v563
        %601 = vmatprep.subr.mxu0 0.0
        %602 = vmatpush1.msra.mxu0 0.0
        %603 = vmatprep.subr.mxu0 0.0
        %604 = vmatpush1.msra.mxu0 0.0
        %605 = vmatprep.subr.mxu0 0.0
        %606 = vmatpush1.msra.mxu0 0.0
        %607 = vmatprep.subr.mxu0 0.0
        %608 = vmatpush1.msra.mxu0 0.0
        %609 = vmatprep.subr.mxu0 0.0
        %610 = vmatpush1.msra.mxu0 0.0
        %611 = vmatprep.subr.mxu0 0.0
        %612 = vmatpush1.msra.mxu0 0.0
        %613 = vmatprep.subr.mxu0 0.0
        %614 = vmatpush1.msra.mxu0 0.0
        %615 = vmatprep.subr.mxu0 0.0
        %616 = vmatpush1.msra.mxu0 0.0
        %617 = vmatprep.subr.mxu0 0.0
        %618 = vmatpush1.msra.mxu0 0.0
        %619 = vmatprep.subr.mxu0 0.0
        %620 = vmatpush1.msra.mxu0 0.0
        %621 = vmatprep.subr.mxu0 0.0
        %622 = vmatpush1.msra.mxu0 0.0
        %623 = vmatprep.subr.mxu0 0.0
        %624 = vmatpush1.msra.mxu0 0.0
        %625 = vmatprep.subr.mxu0 0.0
        %626 = vmatpush1.msra.mxu0 0.0
        %627 = vmatprep.subr.mxu0 0.0
        %628 = vmatpush1.msra.mxu0 0.0
        %629 = vmatprep.subr.mxu0 0.0
        %630 = vmatpush1.msra.mxu0 0.0
        %631 = vmatprep.subr.mxu0 0.0
        %632 = vmatpush1.msra.mxu0 0.0
        %633 = vmatprep.subr.mxu0 0.0
        %634 = vmatpush1.msra.mxu0 0.0
        %635 = vmatprep.subr.mxu0 0.0
        %636 = vmatpush1.msra.mxu0 0.0
        %637 = vmatprep.subr.mxu0 0.0
        %638 = vmatpush1.msra.mxu0 0.0
        %639 = vmatprep.subr.mxu0 0.0
        %640 = vmatpush1.msra.mxu0 0.0
        %641 = vmatprep.subr.mxu0 0.0
        %642 = vmatpush1.msra.mxu0 0.0
        %643 = vmatprep.subr.mxu0 0.0
        %644 = vmatpush1.msra.mxu0 0.0
        %645 = vmatprep.subr.mxu0 0.0
        %646 = vmatpush1.msra.mxu0 0.0
        %647 = vmatprep.subr.mxu0 0.0
        %648 = vmatpush1.msra.mxu0 0.0
        %649 = vmatprep.subr.mxu0 0.0
        %650 = vmatpush1.msra.mxu0 0.0
        %651 = vmatprep.subr.mxu0 0.0
        %652 = vmatpush1.msra.mxu0 0.0
        %653 = vmatprep.subr.mxu0 0.0
        %654 = vmatpush1.msra.mxu0 0.0
        %655 = vmatprep.subr.mxu0 0.0
        %656 = vmatpush1.msra.mxu0 0.0
        %657 = vmatprep.subr.mxu0 0.0
        %658 = vmatpush1.msra.mxu0 0.0
        %659 = vmatprep.subr.mxu0 0.0
        %660 = vmatpush1.msra.mxu0 0.0
        %661 = vmatprep.subr.mxu0 0.0
        %662 = vmatpush1.msra.mxu0 0.0
        %663 = vmatprep.mubr.f32.mxu0 0.0
        %664 = vmatmul.mubr.f32.gmra.mrb[0].mxu0 %v597
        %v665 = vpop.f32.mrb[0].mxu0
        %v666 = vadd.f32 0.0, %v665
        %v667 = vpop.f32.mrb[0].mxu0
        %668 = vdwg.mxu0
        %v669 = vadd.f32 %v595, %v666
        %670 = vst.msk [vmem:[#allocation4] sm:$0xff] %vm352, %v669
        %671 = vst.msk [vmem:[#allocation2] sm:$0xff] %vm587, %v569
        %p672 = scmp.eq.s32.totalorder %s320, %s319
        // Predicated region
        $region41: #{tpu_custom_call.1} parent=35 // pred_check
          %p673 = pneg %p672
        $region42: #{tpu_custom_call.1} parent=35 // pred_check_branch
          %675 = sbr.rel (%p673) target = $region44
        $region43: #{tpu_custom_call.1} parent=35 // pred_region
          %v676 = vld [vmem:[#allocation3] sm:$0xff]
          %v677 = vrcp.pop %v676
          %v678 = vld [vmem:[#allocation4] sm:$0xff]
          %680 = vset.pattern.permute.xlu0 0
          %681 = vperm.xlu0 %680, %v677
          %v682 = vpop.permute.xlu0 %681
          %v684 = vmul.f32 %v678, %v682
          %685 = vst.msk [vmem:[%s287] sm:$0xff] %vm352, %v684
        $region44: #{tpu_custom_call.1} parent=35 // pred_fallthru
          _
        %s686 = sand.u32 %s165, 1
        %s687 = scalar_lea.sflag [#allocation9], %s686
        %s688 = sand.u32 %s165, 1
        %s689 = smul.addr %s688, 8
        %s690 = scalar_lea.vmem [#allocation8], %s689
        // Predicated region
        $region45: #{tpu_custom_call.1} parent=35 // pred_check
          %p691 = pneg %p175
        $region46: #{tpu_custom_call.1} parent=35 // pred_check_branch
          %693 = sbr.rel (%p691) target = $region48
        $region47: #{tpu_custom_call.1} parent=35 // pred_region
          %s694 = sld [smem:[#allocation6 + %s35]]
          %s696 = ssub.s32 128, 128
          %697 = vsyncadd %s687, %s696
          %s698 = smul.addr %s34, 2
          %s699 = sadd.s32 %s694, %s698
          %s700 = smul.addr %s699, 128
          %s701 = scalar_lea.hbm %s6, %s700
          %s703 = sshll.u32 %s690, 4
          %s704 = int_to_ptr.vmem [resolvable:$true] %s703
          %706 = dma.vmem_to_hbm [thread:$0]  %s704, 128, %s701, %s687
        $region48: #{tpu_custom_call.1} parent=35 // pred_fallthru
          _
      $region36: #{tpu_custom_call.1} parent=5 // pred_fallthru
        _
      %p707 = scmp.le.s32.totalorder 2, %s25
      // Predicated region
      $region49: #{tpu_custom_call.1} parent=5 // pred_check
        %p708 = pneg %p707
      $region50: #{tpu_custom_call.1} parent=5 // pred_check_branch
        %710 = sbr.rel (%p708) target = $region52
      $region51: #{tpu_custom_call.1} parent=5 // pred_region
        %s711 = ssub.s32 %s25, 2
        // Predicated region
        $region53: #{tpu_custom_call.1} parent=51 // pred_check
          %p712 = pneg %p181
        $region54: #{tpu_custom_call.1} parent=51 // pred_check_branch
          %714 = sbr.rel (%p712) target = $region56
        $region55: #{tpu_custom_call.1} parent=51 // pred_region
          %s715 = sand.u32 %s166, 1
          %s716 = scalar_lea.sflag [#allocation9], %s715
          %s717 = sand.u32 %s166, 1
          %s718 = smul.addr %s717, 8
          %s719 = scalar_lea.vmem [#allocation8], %s718
          %720 = dma.done %s716, 128
        $region56: #{tpu_custom_call.1} parent=51 // pred_fallthru
          _
      $region52: #{tpu_custom_call.1} parent=5 // pred_fallthru
        _
    $region6: #{tpu_custom_call.1} parent=1 // loop_footer
      %s29 = sadd.s32 1, %s25
    $region7: #{tpu_custom_call.1} parent=1 // loop_footer_branch
      %24 = sbr.rel target = $region3
    $region8: #{tpu_custom_call.1} parent=1 // loop_exit
      _
    %721 = vsyncpa [#allocation9], 1
    %s722 = scalar_lea.sflag [#allocation9], 1
    %723 = vsyncpa %s722, 1

</llo_original>
